<compile_context>
chip_gen: v7x
topology: tpu7x:2x2x1
jax: 0.10.0
libtpu: 0.0.40
codegen_flags: <defaults>
</compile_context>

<pallas_src>
import functools

import jax
import jax.numpy as jnp
from jax import lax
from jax.experimental import pallas as pl
from jax.experimental.pallas import tpu as pltpu


_STATIC_UNROLL_ROWS = 32   # fully-static row copies at/below this tile size
_LOOP_UNROLL = 8           # partial unroll for the fori_loop copy path


def _round_up(x, m):
    return ((x + m - 1) // m) * m


def _chip_config():
    """Per-generation VMEM budget + megacore flag (defensive defaults)."""
    vmem_cap = 64 * 1024 * 1024          # conservative fallback (v7x per-TC VMEM)
    multi_tc = False
    try:
        vmem_cap = int(getattr(pltpu.get_tpu_info(), "vmem_capacity_bytes", vmem_cap))
    except Exception:
        pass
    try:
        kind = jax.devices()[0].device_kind.lower()
        multi_tc = ("v7" in kind) or ("7x" in kind)   # v7x: 2 TensorCores/chip
    except Exception:
        pass
    # v5e/v6e (128 MiB physical) -> ~96 MiB scoped; v7x (64 MiB) -> ~48 MiB.
    vmem_limit = min((vmem_cap * 3) // 4, 100 * 1024 * 1024)
    tile_budget = (vmem_limit * 9) // 10   # headroom for internal scratch
    return vmem_limit, tile_budget, multi_tc


def _pick_row_tile(S, D, itemsize, budget, slots, prefer_even_steps):
    """Largest divisor of S (capped at S//2 so the grid has >= 2 steps) whose
    per-step footprint -- double-buffered (ti, S, D) output block + `slots`
    window buffers -- fits the VMEM budget.  On multi-TC chips prefer an even
    step count so the grid splits evenly across the two TensorCores."""
    def fits(ti):
        win_stride = _round_up(S + ti - 1, 8)
        need = (2 * ti * S * D + slots * win_stride * D) * itemsize
        return need <= budget

    cap = max(1, S // 2)
    fitting = [d for d in range(1, cap + 1) if S % d == 0 and fits(d)]
    if not fitting:
        # TODO(synk): add a j-axis tile (out block (ti, tj, D), window
        # (tj + ti - 1, D)) so extreme S*D (e.g. S>=4096, D>=1024 f32 on v7x)
        # still fits VMEM instead of falling back to ti=1.
        return 1
    if prefer_even_steps:
        even = [d for d in fitting if (S // d) % 2 == 0]
        if even:
            return max(even)
    return max(fitting)


def _rel_pos_kernel(rev_hbm, out_ref, win_ref, sem, *,
                    max_seq_len, seq_len, ti, win_stride, prefetch):
    """out[i] = rev[M-1-i : M-1-i+S, :] for the `ti` output rows of this tile.

    rev_hbm : (2M-1, D) reversed embedding table, left in HBM (pl.ANY)
    out_ref : (ti, S, D) output block in VMEM (pipelined to HBM by Pallas)
    win_ref : (slots*win_stride, D) VMEM scratch holding the fetched window(s)
    sem     : DMA completion semaphore(s), one per window slot
    """
    ib = pl.program_id(0)
    win_rows = seq_len + ti - 1

    def window_dma(step, slot):
        # rev rows needed by output rows i in [step*ti, step*ti + ti):
        #   [M - ti - step*ti, M - ti - step*ti + S + ti - 1)   (in bounds for
        #   all steps: start >= M - S >= 0, end <= M + S - 1 <= 2M - 1)
        start = max_seq_len - ti - step * ti
        return pltpu.make_async_copy(
            rev_hbm.at[pl.ds(start, win_rows), :],
            win_ref.at[pl.ds(slot * win_stride, win_rows), :],
            sem.at[slot],
        )

    if prefetch:
        # Sequential grid ("arbitrary"): double-buffered window fetch.
        slot = ib % 2

        @pl.when(ib == 0)
        def _():
            window_dma(0, 0).start()          # prime the first window

        @pl.when(ib + 1 < pl.num_programs(0))  # guard: never a negative start
        def _():
            window_dma(ib + 1, 1 - slot).start()   # prefetch next step's window

        window_dma(ib, slot).wait()
        base = slot * win_stride
    else:
        # Megacore-safe ("parallel"): no state carried across grid steps.
        window_dma(ib, 0).start()
        window_dma(ib, 0).wait()
        base = 0

    # Output row r of this tile (global i = ib*ti + r) starts at window row
    # (M - 1 - i) - window_start = ti - 1 - r.
    def copy_row(r):
        out_ref[r] = win_ref[pl.ds(base + (ti - 1 - r), seq_len), :]

    if ti <= _STATIC_UNROLL_ROWS:
        for r in range(ti):                    # fully static slices
            copy_row(r)
    else:
        def body(r, carry):
            copy_row(r)
            return carry
        # Partial unroll: lets the scheduler interleave vld/vst across rows.
        lax.fori_loop(0, ti, body, 0, unroll=_LOOP_UNROLL)


def relative_position_encoding(x, rel_pos_embedding, max_seq_len, *,
                               ti=None, rev_table=None):
    """JAX wrapper matching RelativePositionEncoding.forward(x).

    x                 : (B, S, D)  -- only S is used (as in the PyTorch module)
    rel_pos_embedding : (2*max_seq_len - 1, D)
    rev_table         : optional pre-reversed table (hoist the flip out of the
                        per-call path for repeated forwards)
    returns           : (S, S, D) with rel_pos_embedding's dtype
    """
    _, S, D = x.shape
    T = 2 * max_seq_len - 1
    assert rel_pos_embedding.shape == (T, D)
    assert 1 <= S <= max_seq_len

    dtype = rel_pos_embedding.dtype
    itemsize = jnp.dtype(dtype).itemsize

    vmem_limit, budget, multi_tc = _chip_config()
    prefetch = not multi_tc          # single TC: hide the window DMA latency
    slots = 2 if prefetch else 1     # v7x: keep steps stateless & core-splittable

    if ti is None:
        ti = _pick_row_tile(S, D, itemsize, budget, slots,
                            prefer_even_steps=multi_tc)
    assert S % ti == 0
    win_stride = _round_up(S + ti - 1, 8)
    n_steps = S // ti

    # Reverse once so every output row is a contiguous slice of the table.
    rev = jnp.flip(rel_pos_embedding, axis=0) if rev_table is None else rev_table

    kernel = functools.partial(
        _rel_pos_kernel, max_seq_len=max_seq_len, seq_len=S, ti=ti,
        win_stride=win_stride, prefetch=prefetch)

    out_bytes = S * S * D * itemsize
    read_bytes = n_steps * (S + ti - 1) * D * itemsize

    # TODO(synk): for D % 128 != 0, emit a lane-dense flattened output
    # ((S, S*D) blocks) to avoid masked vst partial stores; realistic d_model
    # is a multiple of 128 so the (ti, S, D) block is already lane-dense.
    return pl.pallas_call(
        kernel,
        out_shape=jax.ShapeDtypeStruct((S, S, D), dtype),
        grid_spec=pltpu.PrefetchScalarGridSpec(
            num_scalar_prefetch=0,
            grid=(n_steps,),
            in_specs=[pl.BlockSpec(memory_space=pl.ANY)],   # table stays in HBM
            out_specs=pl.BlockSpec((ti, S, D), lambda i: (i, 0, 0)),
            scratch_shapes=[
                pltpu.VMEM((slots * win_stride, D), dtype),
                pltpu.SemaphoreType.DMA((slots,)),
            ],
        ),
        compiler_params=pltpu.CompilerParams(
            # prefetch carries window state across steps -> must be sequential;
            # on v7x drop the prefetch and let the 2 TCs split the grid.
            dimension_semantics=("arbitrary",) if prefetch else ("parallel",),
            vmem_limit_bytes=vmem_limit,
        ),
        cost_estimate=pl.CostEstimate(
            flops=0, transcendentals=0,
            bytes_accessed=out_bytes + read_bytes),
    )(rev)


if __name__ == "__main__":
    # Small, deterministic setup consistent with the module's forward.
    batch = 2
    max_seq_len = 8
    d_model = 32
    seq_len = max_seq_len  # x: [B, S, D]

    key = jax.random.PRNGKey(0)
    k_emb, k_x = jax.random.split(key)

    # Parameter init (torch.randn equivalent), deterministic.
    rel_pos_embedding = jax.random.normal(
        k_emb, (2 * max_seq_len - 1, d_model), dtype=jnp.float32
    )
    x = jax.random.normal(k_x, (batch, seq_len, d_model), dtype=jnp.float32)

    out = relative_position_encoding(x, rel_pos_embedding, max_seq_len)
    out = jax.block_until_ready(out)

    # Pure-JAX reference (gather semantics of the PyTorch forward).
    pos = jnp.arange(seq_len)
    rel_idx = pos[:, None] - pos[None, :] + max_seq_len - 1
    ref = rel_pos_embedding[rel_idx]

    assert out.shape == (seq_len, seq_len, d_model)
    assert out.dtype == rel_pos_embedding.dtype
    assert jnp.array_equal(out, ref)

    print("KERNEL_OK")
</pallas_src>

<mosaic_0001>
module attributes {stable_mosaic.version = 11 : i64} {
  func.func @_rel_pos_kernel(%arg0: i32, %arg1: memref<15x32xf32, #tpu.memory_space<any>>, %arg2: memref<4x8x32xf32, #tpu.memory_space<vmem>>, %arg3: memref<32x32xf32, #tpu.memory_space<vmem>>, %arg4: memref<2x!tpu.dma_semaphore, #tpu.memory_space<semaphore_mem>>) attributes {dimension_semantics = [#tpu.dimension_semantics<arbitrary>], iteration_bounds = array<i64: 2>, scalar_prefetch = 0 : i64, scratch_operands = 2 : i64, tpu.core_type = #tpu.core_type<tc>, window_params = [{}, {transform_indices = @transform_1, window_bounds = array<i64: 4, 8, 32>}]} {
    %c2_i32 = arith.constant 2 : i32
    %c0_i32 = arith.constant 0 : i32
    %0 = arith.cmpi eq, %c2_i32, %c0_i32 : i32
    %c1_i32 = arith.constant 1 : i32
    %1 = arith.select %0, %c1_i32, %c2_i32 : i32
    %2 = arith.remsi %arg0, %1 : i32
    %c0_i32_0 = arith.constant 0 : i32
    %3 = arith.cmpi ne, %2, %c0_i32_0 : i32
    %c0_i32_1 = arith.constant 0 : i32
    %4 = arith.cmpi slt, %2, %c0_i32_1 : i32
    %c0_i32_2 = arith.constant 0 : i32
    %5 = arith.cmpi slt, %1, %c0_i32_2 : i32
    %6 = arith.xori %4, %5 : i1
    %7 = arith.andi %6, %3 : i1
    %8 = arith.addi %2, %1 : i32
    %9 = arith.select %7, %8, %2 : i32
    %c0_i32_3 = arith.constant 0 : i32
    %10 = arith.cmpi eq, %arg0, %c0_i32_3 : i32
    %11 = arith.extui %10 : i1 to i32
    %c0_i32_4 = arith.constant 0 : i32
    %12 = arith.cmpi ne, %11, %c0_i32_4 : i32
    scf.if %12 {
      %c0_i32_27 = arith.constant 0 : i32
      %c4_i32_28 = arith.constant 4 : i32
      %c0_i32_29 = arith.constant 0 : i32
      %49 = tpu.memref_slice %arg1[%c4_i32_28, %c0_i32_29] : memref<15x32xf32, #tpu.memory_space<any>> -> memref<11x32xf32, #tpu.memory_space<any>>
      %c0_i32_30 = arith.constant 0 : i32
      %c0_i32_31 = arith.constant 0 : i32
      %50 = tpu.memref_slice %arg3[%c0_i32_30, %c0_i32_31] : memref<32x32xf32, #tpu.memory_space<vmem>> -> memref<11x32xf32, #tpu.memory_space<vmem>>
      %51 = tpu.memref_slice %arg4[%c0_i32_27] : memref<2x!tpu.dma_semaphore, #tpu.memory_space<semaphore_mem>> -> memref<1x!tpu.dma_semaphore, #tpu.memory_space<semaphore_mem>>
      %52 = tpu.memref_squeeze %51 : memref<1x!tpu.dma_semaphore, #tpu.memory_space<semaphore_mem>> -> memref<!tpu.dma_semaphore, #tpu.memory_space<semaphore_mem>>
      tpu.enqueue_dma source(%49 : memref<11x32xf32, #tpu.memory_space<any>>) target(%50 : memref<11x32xf32, #tpu.memory_space<vmem>>) target_semaphore(%52 : memref<!tpu.dma_semaphore, #tpu.memory_space<semaphore_mem>>)
    } else {
    }
    %c1_i32_5 = arith.constant 1 : i32
    %13 = arith.addi %arg0, %c1_i32_5 : i32
    %c2_i32_6 = arith.constant 2 : i32
    %14 = arith.cmpi slt, %13, %c2_i32_6 : i32
    %15 = arith.extui %14 : i1 to i32
    %c0_i32_7 = arith.constant 0 : i32
    %16 = arith.cmpi ne, %15, %c0_i32_7 : i32
    scf.if %16 {
      %c1_i32_27 = arith.constant 1 : i32
      %49 = arith.addi %arg0, %c1_i32_27 : i32
      %c1_i32_28 = arith.constant 1 : i32
      %50 = arith.subi %c1_i32_28, %9 : i32
      %c4_i32_29 = arith.constant 4 : i32
      %51 = arith.muli %49, %c4_i32_29 : i32
      %c4_i32_30 = arith.constant 4 : i32
      %52 = arith.subi %c4_i32_30, %51 : i32
      %c16_i32_31 = arith.constant 16 : i32
      %53 = arith.muli %50, %c16_i32_31 : i32
      %c0_i32_32 = arith.constant 0 : i32
      %54 = tpu.memref_slice %arg1[%52, %c0_i32_32] : memref<15x32xf32, #tpu.memory_space<any>> -> memref<11x32xf32, #tpu.memory_space<any>>
      %c0_i32_33 = arith.constant 0 : i32
      %55 = tpu.memref_slice %arg3[%53, %c0_i32_33] : memref<32x32xf32, #tpu.memory_space<vmem>> -> memref<11x32xf32, #tpu.memory_space<vmem>>
      %56 = tpu.memref_slice %arg4[%50] : memref<2x!tpu.dma_semaphore, #tpu.memory_space<semaphore_mem>> -> memref<1x!tpu.dma_semaphore, #tpu.memory_space<semaphore_mem>>
      %57 = tpu.memref_squeeze %56 : memref<1x!tpu.dma_semaphore, #tpu.memory_space<semaphore_mem>> -> memref<!tpu.dma_semaphore, #tpu.memory_space<semaphore_mem>>
      tpu.enqueue_dma source(%54 : memref<11x32xf32, #tpu.memory_space<any>>) target(%55 : memref<11x32xf32, #tpu.memory_space<vmem>>) target_semaphore(%57 : memref<!tpu.dma_semaphore, #tpu.memory_space<semaphore_mem>>)
    } else {
    }
    %c4_i32 = arith.constant 4 : i32
    %17 = arith.muli %arg0, %c4_i32 : i32
    %c4_i32_8 = arith.constant 4 : i32
    %18 = arith.subi %c4_i32_8, %17 : i32
    %c16_i32 = arith.constant 16 : i32
    %19 = arith.muli %9, %c16_i32 : i32
    %c0_i32_9 = arith.constant 0 : i32
    %20 = tpu.memref_slice %arg1[%18, %c0_i32_9] : memref<15x32xf32, #tpu.memory_space<any>> -> memref<11x32xf32, #tpu.memory_space<any>>
    %c0_i32_10 = arith.constant 0 : i32
    %21 = tpu.memref_slice %arg3[%19, %c0_i32_10] : memref<32x32xf32, #tpu.memory_space<vmem>> -> memref<11x32xf32, #tpu.memory_space<vmem>>
    %22 = tpu.memref_slice %arg4[%9] : memref<2x!tpu.dma_semaphore, #tpu.memory_space<semaphore_mem>> -> memref<1x!tpu.dma_semaphore, #tpu.memory_space<semaphore_mem>>
    %23 = tpu.memref_squeeze %22 : memref<1x!tpu.dma_semaphore, #tpu.memory_space<semaphore_mem>> -> memref<!tpu.dma_semaphore, #tpu.memory_space<semaphore_mem>>
    tpu.wait_dma2 semaphore(%23 : memref<!tpu.dma_semaphore, #tpu.memory_space<semaphore_mem>>) src(%20 : memref<11x32xf32, #tpu.memory_space<any>>) dst(%21 : memref<11x32xf32, #tpu.memory_space<vmem>>)
    %c16_i32_11 = arith.constant 16 : i32
    %24 = arith.muli %9, %c16_i32_11 : i32
    %c3_i32 = arith.constant 3 : i32
    %25 = arith.addi %24, %c3_i32 : i32
    %26 = arith.index_cast %25 : i32 to index
    %c0 = arith.constant 0 : index
    %27 = vector.load %arg3[%26, %c0] : memref<32x32xf32, #tpu.memory_space<vmem>>, vector<8x32xf32>
    %c0_12 = arith.constant 0 : index
    %c0_13 = arith.constant 0 : index
    %c0_14 = arith.constant 0 : index
    %28 = vector.load %arg2[%c0_12, %c0_13, %c0_14] : memref<4x8x32xf32, #tpu.memory_space<vmem>>, vector<1x8x32xf32>
    %29 = vector.shape_cast %28 : vector<1x8x32xf32> to vector<8x32xf32>
    %30 = vector.shape_cast %27 : vector<8x32xf32> to vector<1x8x32xf32>
    tpu.vector_store %arg2[%c0_12, %c0_13, %c0_14], %30 {strides = array<i32>} : memref<4x8x32xf32, #tpu.memory_space<vmem>>, vector<1x8x32xf32>,
    %c2_i32_15 = arith.constant 2 : i32
    %31 = arith.addi %24, %c2_i32_15 : i32
    %32 = arith.index_cast %31 : i32 to index
    %c0_16 = arith.constant 0 : index
    %33 = vector.load %arg3[%32, %c0_16] : memref<32x32xf32, #tpu.memory_space<vmem>>, vector<8x32xf32>
    %c1 = arith.constant 1 : index
    %c0_17 = arith.constant 0 : index
    %c0_18 = arith.constant 0 : index
    %34 = vector.load %arg2[%c1, %c0_17, %c0_18] : memref<4x8x32xf32, #tpu.memory_space<vmem>>, vector<1x8x32xf32>
    %35 = vector.shape_cast %34 : vector<1x8x32xf32> to vector<8x32xf32>
    %36 = vector.shape_cast %33 : vector<8x32xf32> to vector<1x8x32xf32>
    tpu.vector_store %arg2[%c1, %c0_17, %c0_18], %36 {strides = array<i32>} : memref<4x8x32xf32, #tpu.memory_space<vmem>>, vector<1x8x32xf32>,
    %c1_i32_19 = arith.constant 1 : i32
    %37 = arith.addi %24, %c1_i32_19 : i32
    %38 = arith.index_cast %37 : i32 to index
    %c0_20 = arith.constant 0 : index
    %39 = vector.load %arg3[%38, %c0_20] : memref<32x32xf32, #tpu.memory_space<vmem>>, vector<8x32xf32>
    %c2 = arith.constant 2 : index
    %c0_21 = arith.constant 0 : index
    %c0_22 = arith.constant 0 : index
    %40 = vector.load %arg2[%c2, %c0_21, %c0_22] : memref<4x8x32xf32, #tpu.memory_space<vmem>>, vector<1x8x32xf32>
    %41 = vector.shape_cast %40 : vector<1x8x32xf32> to vector<8x32xf32>
    %42 = vector.shape_cast %39 : vector<8x32xf32> to vector<1x8x32xf32>
    tpu.vector_store %arg2[%c2, %c0_21, %c0_22], %42 {strides = array<i32>} : memref<4x8x32xf32, #tpu.memory_space<vmem>>, vector<1x8x32xf32>,
    %c0_i32_23 = arith.constant 0 : i32
    %43 = arith.addi %24, %c0_i32_23 : i32
    %44 = arith.index_cast %43 : i32 to index
    %c0_24 = arith.constant 0 : index
    %45 = vector.load %arg3[%44, %c0_24] : memref<32x32xf32, #tpu.memory_space<vmem>>, vector<8x32xf32>
    %c3 = arith.constant 3 : index
    %c0_25 = arith.constant 0 : index
    %c0_26 = arith.constant 0 : index
    %46 = vector.load %arg2[%c3, %c0_25, %c0_26] : memref<4x8x32xf32, #tpu.memory_space<vmem>>, vector<1x8x32xf32>
    %47 = vector.shape_cast %46 : vector<1x8x32xf32> to vector<8x32xf32>
    %48 = vector.shape_cast %45 : vector<8x32xf32> to vector<1x8x32xf32>
    tpu.vector_store %arg2[%c3, %c0_25, %c0_26], %48 {strides = array<i32>} : memref<4x8x32xf32, #tpu.memory_space<vmem>>, vector<1x8x32xf32>,
    return
  }
  func.func @transform_1(%arg0: i32) -> (i32, i32, i32) {
    %c0_i32 = arith.constant 0 : i32
    %c0_i32_0 = arith.constant 0 : i32
    %c0_i32_1 = arith.constant 0 : i32
    return %arg0, %c0_i32, %c0_i32_0 : i32, i32, i32
  }
}

</mosaic_0001>

<llo_original>
// kernel: tpu_custom_call.1
$region0: #{tpu_custom_call.1}
  #allocation0 [shape = 'u32[]', space=smem, size = 0x4, offset = 0x4, fixed_abs, tag = 'smem constant byte address 0x4 - core index']
  #allocation1 [shape = 'u32[144,128]{1,0:T(1,128)}', space=vmem, size = 0x12000, scoped, tag = 'internal scratch']
  #allocation2 [shape = 'f32[32,32]{1,0:T(8,128)}', space=vmem, size = 0x4000, scoped, tag = 'scratch operand']
  #allocation3 [shape = 's32[2]{0}', space=sflag, size = 0x8, scoped, tag = 'scratch operand']
  #allocation6 [shape = 's32[]', space=sflag, size = 0x4, offset = 0, fixed_abs, tag = 'sflag constant byte address 0x0 - dummy sync flag']
  #allocation7 [shape = 's32[]', space=sflag, size = 0x4, offset = 0, fixed_abs, tag = 'sflag constant byte address 0x0 - dummy sync flag']
  #allocation8 [shape = 'u32[]', space=smem, size = 0x4, offset = 0x44, fixed_abs, tag = 'smem constant byte address 0x44 - assertion arg 0']
  #allocation9 [shape = 'u32[]', space=smem, size = 0x4, offset = 0x48, fixed_abs, tag = 'smem constant byte address 0x48 - assertion arg 1']
  #allocation10 [shape = 's32[]', space=sflag, size = 0x4, offset = 0, fixed_abs, tag = 'sflag constant byte address 0x0 - dummy sync flag']
  #allocation11 [shape = 's32[]', space=sflag, size = 0x4, offset = 0, fixed_abs, tag = 'sflag constant byte address 0x0 - dummy sync flag']
  %s0 = inlined_call_operand.hbm [shape: f32[15,32], index: 0, kind: input, shape index: {}]
  %s1 = inlined_call_operand.hbm [shape: f32[8,8,32], index: 1, kind: output, shape index: {}]
  %s2 = sld [smem:[#allocation0]]
  $region41: #{tpu_custom_call.1} parent=0
    _
  %s4 = ssub.s32 1, %s2
  %s5 = scalar_select 0, %s4, %s2
  $region1: #{tpu_custom_call.1} parent=0
    #allocation4 [shape = 'u8[32768]{0}', space=vmem, size = 0x8000, scoped, tag = 'output window, operand 0']
    #allocation5 [shape = 's32[2]{0}', space=sflag, size = 0x8, scoped, tag = 'scoped memory for tpu_custom_call.1']
    %6 = vsyncpa [#allocation5], 0
    %s7 = scalar_lea.sflag [#allocation5], 1
    %8 = vsyncpa %s7, 0
    loop: start=0, step=1, limit=3
    $region2: #{tpu_custom_call.1} parent=1 // loop_pre_header
      _
    $region3: #{tpu_custom_call.1} parent=1 // loop_header
      %s10 = sphi 0, %s14
      %p11 = scmp.ge.s32.totalorder %s10, 3
      %s19 = sphi 0, %s21
      %s22 = sphi 0, %s19
      %s32 = sphi 0, %s22
    $region4: #{tpu_custom_call.1} parent=1 // loop_header_branch
      %13 = sbr.rel (%p11) target = $region8
    $region5: #{tpu_custom_call.1} parent=1 // loop_body
      %s15 = ssub.s32 %s10, 1
      %s16 = sadd.s32 %s10, 1
      %s17 = ssub.s32 %s10, %s16
      %p18 = scmp.eq.s32.totalorder %s17, 0
      %s20 = sadd.s32 %s19, 1
      %s21 = scalar_select %p18, %s19, %s20
      %p23 = pneg %p18
      %p24 = scmp.eq.s32.totalorder %s10, 1
      %p25 = por %p23, %p24
      %p26 = scmp.ne.s32.totalorder %s19, %s22
      %p27 = scmp.eq.s32.totalorder %s10, 0
      %p28 = por %p26, %p27
      %p29 = scmp.ne.s32.totalorder %s19, %s22
      %p30 = scmp.eq.s32.totalorder %s15, 1
      %p31 = por %p29, %p30
      %p33 = scmp.ne.s32.totalorder %s22, %s32
      %p34 = scmp.eq.s32.totalorder %s15, 0
      %p35 = por %p33, %p34
      %p36 = scmp.lt.s32.totalorder %s10, 2
      // Predicated region
      $region9: #{tpu_custom_call.1} parent=5 // pred_check
        %p37 = pneg %p36
      $region10: #{tpu_custom_call.1} parent=5 // pred_check_branch
        %39 = sbr.rel (%p37) target = $region12
      $region11: #{tpu_custom_call.1} parent=5 // pred_region
        %p40 = pneg %p28
        %p41 = pneg %p25
        %s42 = sand.u32 %s19, 1
        %s43 = scalar_lea.sflag [#allocation5], %s42
        %s44 = sand.u32 %s19, 1
        %s45 = smul.addr %s44, 32
        %s46 = scalar_lea.vmem [#allocation4], %s45
        %s47 = smul.u32 4, %s10
        %p48 = scmp.lt.s32.totalorder %s10, 0
        %s49 = ssub.s32 0, %s10
        %s50 = scalar_select %p48, %s49, %s10
        %s51 = sand.u32 %s50, 1
        %s52 = ssub.s32 0, %s51
        %s53 = scalar_select %p48, %s52, %s51
        %p54 = scmp.ne.s32.totalorder %s53, 0
        %p55 = scmp.lt.s32.totalorder %s53, 0
        %p56 = pnand %p55, %p54
        %p57 = pneg %p56
        %s58 = sadd.s32 %s53, 2
        %s59 = scalar_select %p57, %s58, %s53
        %p60 = scmp.eq.s32.totalorder %s10, 0
        // Predicated region
        $region13: #{tpu_custom_call.1} parent=11 // pred_check
          %p61 = pneg %p60
        $region14: #{tpu_custom_call.1} parent=11 // pred_check_branch
          %63 = sbr.rel (%p61) target = $region16
        $region15: #{tpu_custom_call.1} parent=11 // pred_region
          %s64 = scalar_lea.hbm %s0, 64
          // Predicated region
          $region17: #{tpu_custom_call.1} parent=15 // pred_check
            _
          $region18: #{tpu_custom_call.1} parent=15 // pred_check_branch
            %66 = sbr.rel target = $region20
          $region19: #{tpu_custom_call.1} parent=15 // pred_region
            %67 = sst [smem:[#allocation8]] [#allocation7]
            %68 = sst [smem:[#allocation9]] [#allocation6]
          $region20: #{tpu_custom_call.1} parent=15 // pred_fallthru
            _
          %70 = shalt.err (0)
          %s72 = sshll.u32 [#allocation2], 4
          %s73 = int_to_ptr.vmem [resolvable:$true] %s72
          %75 = dma.hbm_to_vmem [thread:$0]  %s64, 176, %s73, [#allocation3]
        $region16: #{tpu_custom_call.1} parent=11 // pred_fallthru
          _
        %s76 = sadd.s32 %s10, 1
        %p77 = scmp.lt.s32.totalorder %s76, 2
        // Predicated region
        $region21: #{tpu_custom_call.1} parent=11 // pred_check
          %p78 = pneg %p77
        $region22: #{tpu_custom_call.1} parent=11 // pred_check_branch
          %80 = sbr.rel (%p78) target = $region24
        $region23: #{tpu_custom_call.1} parent=11 // pred_region
          %s81 = ssub.s32 1, %s59
          %s82 = smul.u32 %s76, 4
          %s83 = ssub.s32 4, %s82
          %s84 = smul.u32 %s81, 16
          %s85 = smul.addr %s83, 16
          %s86 = scalar_lea.hbm %s0, %s85
          %s87 = scalar_lea.vmem [#allocation2], %s84
          %s88 = scalar_lea.sflag [#allocation3], %s81
          // Predicated region
          $region25: #{tpu_custom_call.1} parent=23 // pred_check
            _
          $region26: #{tpu_custom_call.1} parent=23 // pred_check_branch
            %90 = sbr.rel target = $region28
          $region27: #{tpu_custom_call.1} parent=23 // pred_region
            %91 = sst [smem:[#allocation8]] [#allocation11]
            %92 = sst [smem:[#allocation9]] [#allocation10]
          $region28: #{tpu_custom_call.1} parent=23 // pred_fallthru
            _
          %94 = shalt.err (0)
          %s96 = sshll.u32 %s87, 4
          %s97 = int_to_ptr.vmem [resolvable:$true] %s96
          %99 = dma.hbm_to_vmem [thread:$0]  %s86, 176, %s97, %s88
        $region24: #{tpu_custom_call.1} parent=11 // pred_fallthru
          _
        %s100 = smul.u32 %s59, 16
        %s101 = scalar_lea.sflag [#allocation3], %s59
        %s102 = smul.u32 11, 1
        %s103 = sshll.u32 %s102, 4
        %104 = dma.done %s101, %s103
        %s105 = sadd.s32 %s100, 3
        %s106 = scalar_lea.vmem [#allocation2], %s105
        %v107 = vld [vmem:[%s106] sm:$0xff]
        %vm108 = vcmask 261120
        %109 = vst.msk [vmem:[%s46] sm:$0xff] %vm108, %v107
        %s110 = sadd.s32 %s100, 2
        %s111 = scalar_lea.vmem [#allocation2], %s110
        %v112 = vld [vmem:[%s111] sm:$0xff]
        %s113 = scalar_lea.vmem %s46, 8 [#allocation4]
        %114 = vst.msk [vmem:[%s113] sm:$0xff] %vm108, %v112
        %s115 = sadd.s32 %s100, 1
        %s116 = scalar_lea.vmem [#allocation2], %s115
        %v117 = vld [vmem:[%s116] sm:$0xff]
        %s118 = scalar_lea.vmem %s46, 16 [#allocation4]
        %119 = vst.msk [vmem:[%s118] sm:$0xff] %vm108, %v117
        %s120 = scalar_lea.vmem [#allocation2], %s100
        %v121 = vld [vmem:[%s120] sm:$0xff]
        %s122 = scalar_lea.vmem %s46, 24 [#allocation4]
        %123 = vst.msk [vmem:[%s122] sm:$0xff] %vm108, %v121
        %s124 = sand.u32 %s19, 1
        %s125 = scalar_lea.sflag [#allocation5], %s124
        %s126 = sand.u32 %s19, 1
        %s127 = smul.addr %s126, 32
        %s128 = scalar_lea.vmem [#allocation4], %s127
        // Predicated region
        $region29: #{tpu_custom_call.1} parent=11 // pred_check
          %p129 = pneg %p25
        $region30: #{tpu_custom_call.1} parent=11 // pred_check_branch
          %131 = sbr.rel (%p129) target = $region32
        $region31: #{tpu_custom_call.1} parent=11 // pred_region
          %s132 = smul.u32 4, %s10
          %s134 = ssub.s32 512, 512
          %135 = vsyncadd %s125, %s134
          %s136 = smul.addr %s132, 128
          %s137 = scalar_lea.hbm %s1, %s136
          %s138 = sshll.u32 %s128, 4
          %s139 = int_to_ptr.vmem [resolvable:$true] %s138
          %144 = dma.vmem_to_hbm [thread:$0]  %s139, 512, %s137, %s125, 128, 128, 8
        $region32: #{tpu_custom_call.1} parent=11 // pred_fallthru
          _
      $region12: #{tpu_custom_call.1} parent=5 // pred_fallthru
        _
      %p145 = scmp.le.s32.totalorder 1, %s10
      // Predicated region
      $region33: #{tpu_custom_call.1} parent=5 // pred_check
        %p146 = pneg %p145
      $region34: #{tpu_custom_call.1} parent=5 // pred_check_branch
        %148 = sbr.rel (%p146) target = $region36
      $region35: #{tpu_custom_call.1} parent=5 // pred_region
        %s149 = ssub.s32 %s10, 1
        // Predicated region
        $region37: #{tpu_custom_call.1} parent=35 // pred_check
          %p150 = pneg %p31
        $region38: #{tpu_custom_call.1} parent=35 // pred_check_branch
          %152 = sbr.rel (%p150) target = $region40
        $region39: #{tpu_custom_call.1} parent=35 // pred_region
          %s153 = sand.u32 %s22, 1
          %s154 = scalar_lea.sflag [#allocation5], %s153
          %s155 = sand.u32 %s22, 1
          %s156 = smul.addr %s155, 32
          %s157 = scalar_lea.vmem [#allocation4], %s156
          %158 = dma.done %s154, 512
        $region40: #{tpu_custom_call.1} parent=35 // pred_fallthru
          _
      $region36: #{tpu_custom_call.1} parent=5 // pred_fallthru
        _
    $region6: #{tpu_custom_call.1} parent=1 // loop_footer
      %s14 = sadd.s32 1, %s10
    $region7: #{tpu_custom_call.1} parent=1 // loop_footer_branch
      %9 = sbr.rel target = $region3
    $region8: #{tpu_custom_call.1} parent=1 // loop_exit
      _
    %159 = vsyncpa [#allocation5], 1
    %s160 = scalar_lea.sflag [#allocation5], 1
    %161 = vsyncpa %s160, 1
  %162 = vsyncmov [#allocation3]
  %s163 = vpop.sfrf %162
  %p164 = scmp.eq.s32.totalorder %s163, 0
  %p165 = pneg %p164
  %167 = shalt.err (%p165)
  %s168 = scalar_lea.sflag [#allocation3], 1
  %169 = vsyncmov %s168
  %s170 = vpop.sfrf %169
  %p171 = scmp.eq.s32.totalorder %s170, 0
  %p172 = pneg %p171
  %174 = shalt.err (%p172)

</llo_original>
